<compile_context>
chip_gen: v7x
topology: tpu7x:2x2x1
jax: 0.10.0
libtpu: 0.0.40
codegen_flags: <defaults>
</compile_context>

<pallas_src>
import functools

import jax
import jax.numpy as jnp
from jax.experimental import pallas as pl
from jax.experimental.pallas import tpu as pltpu


def _round_up(x: int, m: int) -> int:
    return ((x + m - 1) // m) * m


def _apply_act(h, act_fun: str):
    # h is f32 (the MXU accumulator dtype); keep activation math in f32.
    if act_fun in ("silu", "swish"):
        return h * jax.nn.sigmoid(h)
    if act_fun == "gelu":
        # PyTorch nn.GELU default is the exact erf formulation.
        return jax.nn.gelu(h, approximate=False)
    if act_fun == "relu":
        return jnp.maximum(h, 0.0)
    if act_fun == "sigmoid":
        return jax.nn.sigmoid(h)
    if act_fun == "none":
        return h
    raise ValueError(f"unsupported act_fun: {act_fun}")


def glu_kernel(x_ref, w12_ref, w3_ref, o_ref, *scratch, act_fun, tn):
    """One (token-tile i, hidden-tile j) step.

    x_ref   : (tm, Ep)        token tile (resident across j)
    w12_ref : (Ep, 2*tn)      [w1 chunk j | w2 chunk j] packed columns
    w3_ref  : (tn, Ep)        w3 chunk j (rows)
    o_ref   : (tm, Ep)        output tile (resident across j)
    scratch : optional (tm, Ep) f32 accumulator (only for non-f32 outputs)
    """
    acc_ref = scratch[0] if scratch else o_ref   # f32 output accumulates in place
    j = pl.program_id(1)

    @pl.when(j == 0)
    def _():
        acc_ref[...] = jnp.zeros_like(acc_ref)

    x = x_ref[...]
    # Fused first stage: one matmul produces both h1 and h2 for this hidden chunk.
    h = jnp.dot(x, w12_ref[...], preferred_element_type=jnp.float32)   # (tm, 2*tn)
    h1 = h[:, :tn]                                                     # lane-aligned split
    h2 = h[:, tn:]
    g = _apply_act(h1, act_fun) * h2                                   # f32, (tm, tn)

    # Second stage: this hidden chunk's contribution to the output.
    acc_ref[...] += jnp.dot(g.astype(w3_ref.dtype), w3_ref[...],
                            preferred_element_type=jnp.float32)

    if scratch:
        @pl.when(j == pl.num_programs(1) - 1)
        def _():
            o_ref[...] = acc_ref[...].astype(o_ref.dtype)


def pack_glu_weights(w1, w2, w3, *, tn_target=512, weight_tile_budget=24 * 1024 * 1024):
    """Pre-pack GLU weights ONCE (outside the per-call path).

    w1, w2 : (mid_dim, embed_dim)   PyTorch nn.Linear (out, in) layout
    w3     : (embed_dim, mid_dim)

    Returns (w12_packed, w3_packed, meta).  w12_packed is (Ep, 2*Mp) with the
    w1/w2 column chunks interleaved per hidden tile of size tn, so each grid
    step does one fused (tm, Ep) @ (Ep, 2*tn) matmul and a static split.
    """
    M, E = w1.shape
    Ep = _round_up(E, 128)                 # lane-dense embed dim
    Mp = _round_up(M, 128)                 # lane-dense hidden dim

    # Cap the hidden tile so double-buffered weight tiles (w12 + w3 = 3*tn*Ep
    # elems, x2 buffers) fit the per-step weight VMEM budget.
    w_itemsize = jnp.dtype(w1.dtype).itemsize
    tn_cap = max(128, (weight_tile_budget // (6 * Ep * w_itemsize)) // 128 * 128)
    tn_target = min(int(tn_target), tn_cap)

    nj = max(1, -(-Mp // tn_target))       # number of hidden tiles
    tn = _round_up(-(-Mp // nj), 128)      # hidden tile size (multiple of 128)
    Mp = tn * nj

    def pad_to(a, shape):
        pads = [(0, s - d) for s, d in zip(shape, a.shape)]
        return jnp.pad(a, pads) if any(p[1] for p in pads) else a

    w1t = pad_to(w1.T, (Ep, Mp))           # (Ep, Mp)   x @ w1t
    w2t = pad_to(w2.T, (Ep, Mp))
    w3t = pad_to(w3.T, (Mp, Ep))           # (Mp, Ep)   g @ w3t

    # Interleave per hidden tile: columns [j*2tn, j*2tn+tn) = w1 chunk j,
    #                             columns [j*2tn+tn, (j+1)*2tn) = w2 chunk j.
    w12 = jnp.concatenate(
        [w1t.reshape(Ep, nj, tn), w2t.reshape(Ep, nj, tn)], axis=2
    ).reshape(Ep, nj * 2 * tn)             # (Ep, 2*Mp)

    meta = dict(E=E, M=M, Ep=Ep, Mp=Mp, tn=tn, nj=nj)
    return w12, w3t, meta


def glu_forward(x, w12_packed, w3_packed, meta, *, act_fun="silu", tm=256):
    """GLU forward.  x: [B, N, E] -> [B, N, E]."""
    B, N, E = x.shape
    assert E == meta["E"], "x embed dim does not match packed weights"
    Ep, Mp, tn, nj = meta["Ep"], meta["Mp"], meta["tn"], meta["nj"]

    # --- token tiling: pad T to a multiple of the row tile -----------------
    T = B * N
    tm = max(8, (int(tm) // 8) * 8)        # sublane-aligned row tile
    Tp = _round_up(T, 8)
    tm = min(tm, Tp)
    Tp = _round_up(Tp, tm)
    ni = Tp // tm

    xf = x.reshape(T, E)
    if Tp != T or Ep != E:
        xf = jnp.pad(xf, ((0, Tp - T), (0, Ep - E)))   # zero padding is exact here

    itemsize = x.dtype.itemsize
    w_itemsize = w12_packed.dtype.itemsize
    # f32 activations accumulate directly in the resident output block.
    use_scratch = x.dtype != jnp.float32

    # --- advisory cost estimate --------------------------------------------
    flops = 2 * Tp * Ep * (2 * Mp) + 2 * Tp * Mp * Ep
    transcendentals = Tp * Mp if act_fun in ("silu", "swish", "gelu", "sigmoid") else 0
    bytes_accessed = (2 * Tp * Ep) * itemsize \
        + (w12_packed.size + w3_packed.size) * w_itemsize
    cost = pl.CostEstimate(flops=flops,
                           transcendentals=transcendentals,
                           bytes_accessed=bytes_accessed)

    # --- VMEM budget from actual tile sizes ---------------------------------
    vmem_bytes = (
        2 * tm * Ep * itemsize              # x tiles (double-buffered)
        + 2 * tm * Ep * itemsize            # out tiles
        + 2 * Ep * (2 * tn) * w_itemsize    # packed w1|w2 tile
        + 2 * tn * Ep * w_itemsize          # w3 tile
        + (tm * Ep * 4 if use_scratch else 0)   # f32 accumulator scratch
        + tm * (3 * tn) * 4                 # h / g f32 intermediates
    )
    vmem_limit = min(max(2 * vmem_bytes, 4 * 1024 * 1024), 64 * 1024 * 1024)

    kernel = functools.partial(glu_kernel, act_fun=act_fun, tn=tn)
    scratch_shapes = [pltpu.VMEM((tm, Ep), jnp.float32)] if use_scratch else []

    out = pl.pallas_call(
        kernel,
        out_shape=jax.ShapeDtypeStruct((Tp, Ep), x.dtype),
        grid_spec=pltpu.PrefetchScalarGridSpec(
            num_scalar_prefetch=0,
            grid=(ni, nj),                                   # reduction axis last
            in_specs=[
                pl.BlockSpec((tm, Ep), lambda i, j: (i, 0)),      # x (resident over j)
                pl.BlockSpec((Ep, 2 * tn), lambda i, j: (0, j)),  # packed w1|w2 chunk j
                pl.BlockSpec((tn, Ep), lambda i, j: (j, 0)),      # w3 chunk j
            ],
            out_specs=pl.BlockSpec((tm, Ep), lambda i, j: (i, 0)),
            scratch_shapes=scratch_shapes,
        ),
        compiler_params=pltpu.CompilerParams(
            dimension_semantics=("parallel", "arbitrary"),
            vmem_limit_bytes=vmem_limit,
        ),
        cost_estimate=cost,
    )(xf, w12_packed, w3_packed)

    if Tp != T or Ep != E:
        out = out[:T, :E]
    return out.reshape(B, N, E)


def glu_reference(x, w1, w2, w3, *, act_fun="silu"):
    h1 = jnp.einsum("bne,me->bnm", x, w1)
    h2 = jnp.einsum("bne,me->bnm", x, w2)
    g = _apply_act(h1, act_fun) * h2
    return jnp.einsum("bnm,em->bne", g, w3)


if __name__ == "__main__":
    # Small shapes consistent with the module.
    B, N = 2, 8          # batch, tokens
    embed_dim = 32
    mid_dim = 64

    key = jax.random.PRNGKey(0)
    kx, k1, k2, k3 = jax.random.split(key, 4)

    x = jax.random.normal(kx, (B, N, embed_dim), dtype=jnp.float32)

    # Deterministic nn.Linear-style init (uniform(-1/sqrt(fan_in), +)),
    # weight shape (out_features, in_features), bias=False.
    b1 = 1.0 / jnp.sqrt(embed_dim)
    b3 = 1.0 / jnp.sqrt(mid_dim)
    w1 = jax.random.uniform(k1, (mid_dim, embed_dim), jnp.float32, -b1, b1)
    w2 = jax.random.uniform(k2, (mid_dim, embed_dim), jnp.float32, -b1, b1)
    w3 = jax.random.uniform(k3, (embed_dim, mid_dim), jnp.float32, -b3, b3)

    # Pack / transpose / pad weights once (not in the per-call path).
    w12_packed, w3_packed, meta = pack_glu_weights(w1, w2, w3)

    ok = True
    for act_fun in ("silu", "gelu"):
        out = glu_forward(x, w12_packed, w3_packed, meta, act_fun=act_fun)
        out = jax.block_until_ready(out)
        ref = glu_reference(x, w1, w2, w3, act_fun=act_fun)
        assert out.shape == (B, N, embed_dim)
        ok &= bool(jnp.allclose(out, ref, atol=1e-4, rtol=1e-4))

    assert ok, "mismatch vs reference"
    print("KERNEL_OK")
</pallas_src>

<mosaic_0001>
module attributes {stable_mosaic.version = 11 : i64} {
  func.func @glu_kernel(%arg0: i32, %arg1: i32, %arg2: memref<16x128xf32, #tpu.memory_space<vmem>>, %arg3: memref<128x256xf32, #tpu.memory_space<vmem>>, %arg4: memref<128x128xf32, #tpu.memory_space<vmem>>, %arg5: memref<16x128xf32, #tpu.memory_space<vmem>>) attributes {dimension_semantics = [#tpu.dimension_semantics<parallel>, #tpu.dimension_semantics<arbitrary>], iteration_bounds = array<i64: 1, 1>, scalar_prefetch = 0 : i64, scratch_operands = 0 : i64, tpu.core_type = #tpu.core_type<tc>, window_params = [{transform_indices = @transform_0, window_bounds = array<i64: 16, 128>}, {transform_indices = @transform_1, window_bounds = array<i64: 128, 256>}, {transform_indices = @transform_2, window_bounds = array<i64: 128, 128>}, {transform_indices = @transform_3, window_bounds = array<i64: 16, 128>}]} {
    %c0_i32 = arith.constant 0 : i32
    %0 = arith.cmpi eq, %arg1, %c0_i32 : i32
    %1 = arith.extui %0 : i1 to i32
    %c0_i32_0 = arith.constant 0 : i32
    %2 = arith.cmpi ne, %1, %c0_i32_0 : i32
    scf.if %2 {
      %cst_12 = arith.constant 0.000000e+00 : f32
      %20 = vector.broadcast %cst_12 : f32 to vector<16x128xf32>
      %c0_13 = arith.constant 0 : index
      %c0_14 = arith.constant 0 : index
      %21 = vector.load %arg5[%c0_13, %c0_14] : memref<16x128xf32, #tpu.memory_space<vmem>>, vector<16x128xf32>
      tpu.vector_store %arg5[%c0_13, %c0_14], %20 {strides = array<i32>} : memref<16x128xf32, #tpu.memory_space<vmem>>, vector<16x128xf32>,
    } else {
    }
    %c0 = arith.constant 0 : index
    %c0_1 = arith.constant 0 : index
    %3 = vector.load %arg2[%c0, %c0_1] : memref<16x128xf32, #tpu.memory_space<vmem>>, vector<16x128xf32>
    %c0_2 = arith.constant 0 : index
    %c0_3 = arith.constant 0 : index
    %4 = vector.load %arg3[%c0_2, %c0_3] : memref<128x256xf32, #tpu.memory_space<vmem>>, vector<128x256xf32>
    %cst = arith.constant dense<0.000000e+00> : vector<16x256xf32>
    %5 = tpu.matmul %3, %4, %cst {dimension_numbers = #tpu.dot_dimension_numbers<[1], [0], [0], [1], [0, 0, 1, 1], [], []>} : vector<16x128xf32>, vector<128x256xf32>, vector<16x256xf32> -> vector<16x256xf32>
    %6 = vector.extract_strided_slice %5 {offsets = [0, 0], sizes = [16, 128], strides = [1, 1]} : vector<16x256xf32> to vector<16x128xf32>
    %7 = vector.extract_strided_slice %5 {offsets = [0, 128], sizes = [16, 128], strides = [1, 1]} : vector<16x256xf32> to vector<16x128xf32>
    %8 = arith.negf %6 : vector<16x128xf32>
    %9 = math.exp %8 : vector<16x128xf32>
    %cst_4 = arith.constant 1.000000e+00 : f32
    %10 = vector.broadcast %cst_4 : f32 to vector<16x128xf32>
    %11 = arith.addf %10, %9 : vector<16x128xf32>
    %12 = arith.divf %10, %11 : vector<16x128xf32>
    %13 = arith.mulf %6, %12 : vector<16x128xf32>
    %14 = arith.mulf %13, %7 : vector<16x128xf32>
    %c0_5 = arith.constant 0 : index
    %c0_6 = arith.constant 0 : index
    %15 = vector.load %arg5[%c0_5, %c0_6] : memref<16x128xf32, #tpu.memory_space<vmem>>, vector<16x128xf32>
    %c0_7 = arith.constant 0 : index
    %c0_8 = arith.constant 0 : index
    %16 = vector.load %arg4[%c0_7, %c0_8] : memref<128x128xf32, #tpu.memory_space<vmem>>, vector<128x128xf32>
    %cst_9 = arith.constant dense<0.000000e+00> : vector<16x128xf32>
    %17 = tpu.matmul %14, %16, %cst_9 {dimension_numbers = #tpu.dot_dimension_numbers<[1], [0], [0], [1], [0, 0, 1, 1], [], []>} : vector<16x128xf32>, vector<128x128xf32>, vector<16x128xf32> -> vector<16x128xf32>
    %18 = arith.addf %15, %17 : vector<16x128xf32>
    %c0_10 = arith.constant 0 : index
    %c0_11 = arith.constant 0 : index
    %19 = vector.load %arg5[%c0_10, %c0_11] : memref<16x128xf32, #tpu.memory_space<vmem>>, vector<16x128xf32>
    tpu.vector_store %arg5[%c0_10, %c0_11], %18 {strides = array<i32>} : memref<16x128xf32, #tpu.memory_space<vmem>>, vector<16x128xf32>,
    return
  }
  func.func @transform_0(%arg0: i32, %arg1: i32) -> (i32, i32) {
    %c0_i32 = arith.constant 0 : i32
    %c0_i32_0 = arith.constant 0 : i32
    return %arg0, %c0_i32 : i32, i32
  }
  func.func @transform_1(%arg0: i32, %arg1: i32) -> (i32, i32) {
    %c0_i32 = arith.constant 0 : i32
    %c0_i32_0 = arith.constant 0 : i32
    return %c0_i32, %arg1 : i32, i32
  }
  func.func @transform_2(%arg0: i32, %arg1: i32) -> (i32, i32) {
    %c0_i32 = arith.constant 0 : i32
    %c0_i32_0 = arith.constant 0 : i32
    return %arg1, %c0_i32 : i32, i32
  }
  func.func @transform_3(%arg0: i32, %arg1: i32) -> (i32, i32) {
    %c0_i32 = arith.constant 0 : i32
    %c0_i32_0 = arith.constant 0 : i32
    return %arg0, %c0_i32 : i32, i32
  }
}

</mosaic_0001>

<llo_original>
// kernel: tpu_custom_call.1
$region0: #{tpu_custom_call.1}
  #allocation0 [shape = 'u32[]', space=smem, size = 0x4, offset = 0x4, fixed_abs, tag = 'smem constant byte address 0x4 - core index']
  #allocation1 [shape = 'u32[144,128]{1,0:T(1,128)}', space=vmem, size = 0x12000, scoped, tag = 'internal scratch']
  %s0 = inlined_call_operand.hbm [shape: f32[16,128], index: 0, kind: input, shape index: {}]
  %s1 = inlined_call_operand.hbm [shape: f32[128,256], index: 1, kind: input, shape index: {}]
  %s2 = inlined_call_operand.hbm [shape: f32[128,128], index: 2, kind: input, shape index: {}]
  %s3 = inlined_call_operand.hbm [shape: f32[16,128], index: 3, kind: output, shape index: {}]
  %s4 = sld [smem:[#allocation0]]
  $region38: #{tpu_custom_call.1} parent=0
    _
  %s6 = ssub.s32 1, %s4
  %s7 = scalar_select 0, %s6, %s4
  $region1: #{tpu_custom_call.1} parent=0
    #allocation2 [shape = 'u8[8192]{0}', space=vmem, size = 0x2000, scoped, tag = 'input window, operand 0, single buffered']
    #allocation3 [shape = 's32[1]{0}', space=sflag, size = 0x4, scoped, tag = 'scoped memory for tpu_custom_call.1']
    #allocation4 [shape = 's32[1]{0}', space=sflag, size = 0x4, scoped, tag = 'scoped memory for tpu_custom_call.1']
    #allocation5 [shape = 'u8[131072]{0}', space=vmem, size = 0x20000, scoped, tag = 'input window, operand 1, single buffered']
    #allocation6 [shape = 's32[1]{0}', space=sflag, size = 0x4, scoped, tag = 'scoped memory for tpu_custom_call.1']
    #allocation7 [shape = 'u8[65536]{0}', space=vmem, size = 0x10000, scoped, tag = 'input window, operand 2, single buffered']
    #allocation8 [shape = 'u8[8192]{0}', space=vmem, size = 0x2000, scoped, tag = 'output window, operand 0, single buffered']
    %8 = vsyncpa [#allocation3], 0
    %9 = vsyncpa [#allocation6], 0
    %10 = vsyncpa [#allocation4], 0
    // Predicated region
    $region2: #{tpu_custom_call.1} parent=1 // pred_check
      _
    $region3: #{tpu_custom_call.1} parent=1 // pred_check_branch
      %12 = sbr.rel (0) target = $region5
    $region4: #{tpu_custom_call.1} parent=1 // pred_region
      %s14 = ssub.s32 256, 256
      %15 = vsyncadd [#allocation3], %s14
      %s16 = sshll.u32 [#allocation2], 4
      %s17 = int_to_ptr.vmem [resolvable:$true] %s16
      %22 = dma.hbm_to_vmem [thread:$0]  %s0, 256, %s17, [#allocation3], 128, 128, 8
    $region5: #{tpu_custom_call.1} parent=1 // pred_fallthru
      _
    // Predicated region
    $region6: #{tpu_custom_call.1} parent=1 // pred_check
      _
    $region7: #{tpu_custom_call.1} parent=1 // pred_check_branch
      %24 = sbr.rel (0) target = $region9
    $region8: #{tpu_custom_call.1} parent=1 // pred_region
      %s26 = ssub.s32 4096, 4096
      %27 = vsyncadd [#allocation6], %s26
      %s28 = sshll.u32 [#allocation5], 4
      %s29 = int_to_ptr.vmem [resolvable:$true] %s28
      %34 = dma.hbm_to_vmem [thread:$0]  %s1, 4096, %s29, [#allocation6], 256, 256, 16
    $region9: #{tpu_custom_call.1} parent=1 // pred_fallthru
      _
    // Predicated region
    $region10: #{tpu_custom_call.1} parent=1 // pred_check
      _
    $region11: #{tpu_custom_call.1} parent=1 // pred_check_branch
      %36 = sbr.rel (0) target = $region13
    $region12: #{tpu_custom_call.1} parent=1 // pred_region
      %s38 = ssub.s32 2048, 2048
      %39 = vsyncadd [#allocation6], %s38
      %s40 = sshll.u32 [#allocation7], 4
      %s41 = int_to_ptr.vmem [resolvable:$true] %s40
      %46 = dma.hbm_to_vmem [thread:$0]  %s2, 2048, %s41, [#allocation6], 128, 128, 8
    $region13: #{tpu_custom_call.1} parent=1 // pred_fallthru
      _
    // Predicated region
    $region14: #{tpu_custom_call.1} parent=1 // pred_check
      _
    $region15: #{tpu_custom_call.1} parent=1 // pred_check_branch
      %48 = sbr.rel (0) target = $region17
    $region16: #{tpu_custom_call.1} parent=1 // pred_region
      %49 = dma.done [#allocation3], 256
    $region17: #{tpu_custom_call.1} parent=1 // pred_fallthru
      _
    // Predicated region
    $region18: #{tpu_custom_call.1} parent=1 // pred_check
      _
    $region19: #{tpu_custom_call.1} parent=1 // pred_check_branch
      %51 = sbr.rel (0) target = $region21
    $region20: #{tpu_custom_call.1} parent=1 // pred_region
      %52 = dma.done [#allocation6], 4096
    $region21: #{tpu_custom_call.1} parent=1 // pred_fallthru
      _
    // Predicated region
    $region22: #{tpu_custom_call.1} parent=1 // pred_check
      _
    $region23: #{tpu_custom_call.1} parent=1 // pred_check_branch
      %54 = sbr.rel (0) target = $region25
    $region24: #{tpu_custom_call.1} parent=1 // pred_region
      %55 = dma.done [#allocation6], 2048
    $region25: #{tpu_custom_call.1} parent=1 // pred_fallthru
      _
    %p56 = scmp.eq.s32.totalorder 0, 0
    // Predicated region
    $region26: #{tpu_custom_call.1} parent=1 // pred_check
      %p57 = pneg %p56
    $region27: #{tpu_custom_call.1} parent=1 // pred_check_branch
      %59 = sbr.rel (%p57) target = $region29
    $region28: #{tpu_custom_call.1} parent=1 // pred_region
      %60 = vst [vmem:[#allocation8] sm:$0xff] 0.0
      %61 = vst [vmem:[#allocation8 + $0x8] sm:$0xff] 0.0
    $region29: #{tpu_custom_call.1} parent=1 // pred_fallthru
      _
    %v62 = vld [vmem:[#allocation2] sm:$0xff]
    %v63 = vld [vmem:[#allocation2 + $0x8] sm:$0xff]
    %v64 = vld [vmem:[#allocation5] sm:$0xff]
    %v65 = vld [vmem:[#allocation5 + $0x8] sm:$0xff]
    %v66 = vld [vmem:[#allocation5 + $0x10] sm:$0xff]
    %v67 = vld [vmem:[#allocation5 + $0x18] sm:$0xff]
    %v68 = vld [vmem:[#allocation5 + $0x20] sm:$0xff]
    %v69 = vld [vmem:[#allocation5 + $0x28] sm:$0xff]
    %v70 = vld [vmem:[#allocation5 + $0x30] sm:$0xff]
    %v71 = vld [vmem:[#allocation5 + $0x38] sm:$0xff]
    %v72 = vld [vmem:[#allocation5 + $0x40] sm:$0xff]
    %v73 = vld [vmem:[#allocation5 + $0x48] sm:$0xff]
    %v74 = vld [vmem:[#allocation5 + $0x50] sm:$0xff]
    %v75 = vld [vmem:[#allocation5 + $0x58] sm:$0xff]
    %v76 = vld [vmem:[#allocation5 + $0x60] sm:$0xff]
    %v77 = vld [vmem:[#allocation5 + $0x68] sm:$0xff]
    %v78 = vld [vmem:[#allocation5 + $0x70] sm:$0xff]
    %v79 = vld [vmem:[#allocation5 + $0x78] sm:$0xff]
    %v80 = vld [vmem:[#allocation5 + $0x80] sm:$0xff]
    %v81 = vld [vmem:[#allocation5 + $0x88] sm:$0xff]
    %v82 = vld [vmem:[#allocation5 + $0x90] sm:$0xff]
    %v83 = vld [vmem:[#allocation5 + $0x98] sm:$0xff]
    %v84 = vld [vmem:[#allocation5 + $0xa0] sm:$0xff]
    %v85 = vld [vmem:[#allocation5 + $0xa8] sm:$0xff]
    %v86 = vld [vmem:[#allocation5 + $0xb0] sm:$0xff]
    %v87 = vld [vmem:[#allocation5 + $0xb8] sm:$0xff]
    %v88 = vld [vmem:[#allocation5 + $0xc0] sm:$0xff]
    %v89 = vld [vmem:[#allocation5 + $0xc8] sm:$0xff]
    %v90 = vld [vmem:[#allocation5 + $0xd0] sm:$0xff]
    %v91 = vld [vmem:[#allocation5 + $0xd8] sm:$0xff]
    %v92 = vld [vmem:[#allocation5 + $0xe0] sm:$0xff]
    %v93 = vld [vmem:[#allocation5 + $0xe8] sm:$0xff]
    %v94 = vld [vmem:[#allocation5 + $0xf0] sm:$0xff]
    %v95 = vld [vmem:[#allocation5 + $0xf8] sm:$0xff]
    %96 = vmatprep.subr.mxu0 %v65
    %97 = vmatpush1.msra.mxu0 %v64
    %98 = vmatprep.subr.mxu0 %v67
    %99 = vmatpush1.msra.mxu0 %v66
    %100 = vmatprep.subr.mxu0 %v69
    %101 = vmatpush1.msra.mxu0 %v68
    %102 = vmatprep.subr.mxu0 %v71
    %103 = vmatpush1.msra.mxu0 %v70
    %104 = vmatprep.subr.mxu0 %v73
    %105 = vmatpush1.msra.mxu0 %v72
    %106 = vmatprep.subr.mxu0 %v75
    %107 = vmatpush1.msra.mxu0 %v74
    %108 = vmatprep.subr.mxu0 %v77
    %109 = vmatpush1.msra.mxu0 %v76
    %110 = vmatprep.subr.mxu0 %v79
    %111 = vmatpush1.msra.mxu0 %v78
    %112 = vmatprep.subr.mxu0 %v81
    %113 = vmatpush1.msra.mxu0 %v80
    %114 = vmatprep.subr.mxu0 %v83
    %115 = vmatpush1.msra.mxu0 %v82
    %116 = vmatprep.subr.mxu0 %v85
    %117 = vmatpush1.msra.mxu0 %v84
    %118 = vmatprep.subr.mxu0 %v87
    %119 = vmatpush1.msra.mxu0 %v86
    %120 = vmatprep.subr.mxu0 %v89
    %121 = vmatpush1.msra.mxu0 %v88
    %122 = vmatprep.subr.mxu0 %v91
    %123 = vmatpush1.msra.mxu0 %v90
    %124 = vmatprep.subr.mxu0 %v93
    %125 = vmatpush1.msra.mxu0 %v92
    %126 = vmatprep.subr.mxu0 %v95
    %127 = vmatpush1.msra.mxu0 %v94
    %128 = vmatprep.subr.mxu0 0.0
    %129 = vmatpush1.msra.mxu0 0.0
    %130 = vmatprep.subr.mxu0 0.0
    %131 = vmatpush1.msra.mxu0 0.0
    %132 = vmatprep.subr.mxu0 0.0
    %133 = vmatpush1.msra.mxu0 0.0
    %134 = vmatprep.subr.mxu0 0.0
    %135 = vmatpush1.msra.mxu0 0.0
    %136 = vmatprep.subr.mxu0 0.0
    %137 = vmatpush1.msra.mxu0 0.0
    %138 = vmatprep.subr.mxu0 0.0
    %139 = vmatpush1.msra.mxu0 0.0
    %140 = vmatprep.subr.mxu0 0.0
    %141 = vmatpush1.msra.mxu0 0.0
    %142 = vmatprep.subr.mxu0 0.0
    %143 = vmatpush1.msra.mxu0 0.0
    %144 = vmatprep.subr.mxu0 0.0
    %145 = vmatpush1.msra.mxu0 0.0
    %146 = vmatprep.subr.mxu0 0.0
    %147 = vmatpush1.msra.mxu0 0.0
    %148 = vmatprep.subr.mxu0 0.0
    %149 = vmatpush1.msra.mxu0 0.0
    %150 = vmatprep.subr.mxu0 0.0
    %151 = vmatpush1.msra.mxu0 0.0
    %152 = vmatprep.subr.mxu0 0.0
    %153 = vmatpush1.msra.mxu0 0.0
    %154 = vmatprep.subr.mxu0 0.0
    %155 = vmatpush1.msra.mxu0 0.0
    %156 = vmatprep.subr.mxu0 0.0
    %157 = vmatpush1.msra.mxu0 0.0
    %158 = vmatprep.subr.mxu0 0.0
    %159 = vmatpush1.msra.mxu0 0.0
    %160 = vmatprep.mubr.f32.mxu0 0.0
    %161 = vmatmul.mubr.f32.gmra.mrb[0].mxu0 %v62
    %v162 = vpop.f32.mrb[0].mxu0
    %v163 = vadd.f32 0.0, %v162
    %v164 = vpop.f32.mrb[0].mxu0
    %v165 = vadd.f32 0.0, %v164
    %166 = vmatprep.mubr.f32.mxu0 0.0
    %167 = vmatmul.mubr.f32.gmra.mrb[0].mxu0 %v63
    %v168 = vpop.f32.mrb[0].mxu0
    %v169 = vadd.f32 0.0, %v168
    %v170 = vpop.f32.mrb[0].mxu0
    %v171 = vadd.f32 0.0, %v170
    %172 = vdwg.mxu0
    %v173 = vxor.u32 %v163, 2147483648
    %v174 = vxor.u32 %v169, 2147483648
    %v175 = vmul.f32 %v173, 1.442695
    %v176 = vpow.pop %v175
    %v177 = vmul.f32 %v174, 1.442695
    %v178 = vpow.pop %v177
    %v179 = vadd.f32 %v176, 1.0
    %v180 = vadd.f32 %v178, 1.0
    %v181 = vrcp.pop %v179
    %v182 = vmul.f32 1.0, %v181
    %v183 = vrcp.pop %v180
    %v184 = vmul.f32 1.0, %v183
    %v185 = vmul.f32 %v163, %v182
    %v186 = vmul.f32 %v169, %v184
    %v187 = vmul.f32 %v185, %v165
    %v188 = vmul.f32 %v186, %v171
    %v189 = vld [vmem:[#allocation8] sm:$0xff]
    %v190 = vld [vmem:[#allocation8 + $0x8] sm:$0xff]
    %v191 = vld [vmem:[#allocation7] sm:$0xff]
    %v192 = vld [vmem:[#allocation7 + $0x8] sm:$0xff]
    %v193 = vld [vmem:[#allocation7 + $0x10] sm:$0xff]
    %v194 = vld [vmem:[#allocation7 + $0x18] sm:$0xff]
    %v195 = vld [vmem:[#allocation7 + $0x20] sm:$0xff]
    %v196 = vld [vmem:[#allocation7 + $0x28] sm:$0xff]
    %v197 = vld [vmem:[#allocation7 + $0x30] sm:$0xff]
    %v198 = vld [vmem:[#allocation7 + $0x38] sm:$0xff]
    %v199 = vld [vmem:[#allocation7 + $0x40] sm:$0xff]
    %v200 = vld [vmem:[#allocation7 + $0x48] sm:$0xff]
    %v201 = vld [vmem:[#allocation7 + $0x50] sm:$0xff]
    %v202 = vld [vmem:[#allocation7 + $0x58] sm:$0xff]
    %v203 = vld [vmem:[#allocation7 + $0x60] sm:$0xff]
    %v204 = vld [vmem:[#allocation7 + $0x68] sm:$0xff]
    %v205 = vld [vmem:[#allocation7 + $0x70] sm:$0xff]
    %v206 = vld [vmem:[#allocation7 + $0x78] sm:$0xff]
    %207 = vmatprep.subr.mxu0 0.0
    %208 = vmatpush1.msra.mxu0 %v191
    %209 = vmatprep.subr.mxu0 0.0
    %210 = vmatpush1.msra.mxu0 %v192
    %211 = vmatprep.subr.mxu0 0.0
    %212 = vmatpush1.msra.mxu0 %v193
    %213 = vmatprep.subr.mxu0 0.0
    %214 = vmatpush1.msra.mxu0 %v194
    %215 = vmatprep.subr.mxu0 0.0
    %216 = vmatpush1.msra.mxu0 %v195
    %217 = vmatprep.subr.mxu0 0.0
    %218 = vmatpush1.msra.mxu0 %v196
    %219 = vmatprep.subr.mxu0 0.0
    %220 = vmatpush1.msra.mxu0 %v197
    %221 = vmatprep.subr.mxu0 0.0
    %222 = vmatpush1.msra.mxu0 %v198
    %223 = vmatprep.subr.mxu0 0.0
    %224 = vmatpush1.msra.mxu0 %v199
    %225 = vmatprep.subr.mxu0 0.0
    %226 = vmatpush1.msra.mxu0 %v200
    %227 = vmatprep.subr.mxu0 0.0
    %228 = vmatpush1.msra.mxu0 %v201
    %229 = vmatprep.subr.mxu0 0.0
    %230 = vmatpush1.msra.mxu0 %v202
    %231 = vmatprep.subr.mxu0 0.0
    %232 = vmatpush1.msra.mxu0 %v203
    %233 = vmatprep.subr.mxu0 0.0
    %234 = vmatpush1.msra.mxu0 %v204
    %235 = vmatprep.subr.mxu0 0.0
    %236 = vmatpush1.msra.mxu0 %v205
    %237 = vmatprep.subr.mxu0 0.0
    %238 = vmatpush1.msra.mxu0 %v206
    %239 = vmatprep.subr.mxu0 0.0
    %240 = vmatpush1.msra.mxu0 0.0
    %241 = vmatprep.subr.mxu0 0.0
    %242 = vmatpush1.msra.mxu0 0.0
    %243 = vmatprep.subr.mxu0 0.0
    %244 = vmatpush1.msra.mxu0 0.0
    %245 = vmatprep.subr.mxu0 0.0
    %246 = vmatpush1.msra.mxu0 0.0
    %247 = vmatprep.subr.mxu0 0.0
    %248 = vmatpush1.msra.mxu0 0.0
    %249 = vmatprep.subr.mxu0 0.0
    %250 = vmatpush1.msra.mxu0 0.0
    %251 = vmatprep.subr.mxu0 0.0
    %252 = vmatpush1.msra.mxu0 0.0
    %253 = vmatprep.subr.mxu0 0.0
    %254 = vmatpush1.msra.mxu0 0.0
    %255 = vmatprep.subr.mxu0 0.0
    %256 = vmatpush1.msra.mxu0 0.0
    %257 = vmatprep.subr.mxu0 0.0
    %258 = vmatpush1.msra.mxu0 0.0
    %259 = vmatprep.subr.mxu0 0.0
    %260 = vmatpush1.msra.mxu0 0.0
    %261 = vmatprep.subr.mxu0 0.0
    %262 = vmatpush1.msra.mxu0 0.0
    %263 = vmatprep.subr.mxu0 0.0
    %264 = vmatpush1.msra.mxu0 0.0
    %265 = vmatprep.subr.mxu0 0.0
    %266 = vmatpush1.msra.mxu0 0.0
    %267 = vmatprep.subr.mxu0 0.0
    %268 = vmatpush1.msra.mxu0 0.0
    %269 = vmatprep.subr.mxu0 0.0
    %270 = vmatpush1.msra.mxu0 0.0
    %271 = vmatprep.mubr.f32.mxu0 0.0
    %272 = vmatmul.mubr.f32.gmra.mrb[0].mxu0 %v187
    %v273 = vpop.f32.mrb[0].mxu0
    %v274 = vadd.f32 0.0, %v273
    %v275 = vpop.f32.mrb[0].mxu0
    %276 = vmatprep.mubr.f32.mxu0 0.0
    %277 = vmatmul.mubr.f32.gmra.mrb[0].mxu0 %v188
    %v278 = vpop.f32.mrb[0].mxu0
    %v279 = vadd.f32 0.0, %v278
    %v280 = vpop.f32.mrb[0].mxu0
    %281 = vdwg.mxu0
    %v282 = vadd.f32 %v189, %v274
    %v283 = vadd.f32 %v190, %v279
    %284 = vst [vmem:[#allocation8] sm:$0xff] %v282
    %285 = vst [vmem:[#allocation8 + $0x8] sm:$0xff] %v283
    // Predicated region
    $region30: #{tpu_custom_call.1} parent=1 // pred_check
      _
    $region31: #{tpu_custom_call.1} parent=1 // pred_check_branch
      %287 = sbr.rel (0) target = $region33
    $region32: #{tpu_custom_call.1} parent=1 // pred_region
      %s289 = ssub.s32 256, 256
      %290 = vsyncadd [#allocation4], %s289
      %s291 = sshll.u32 [#allocation8], 4
      %s292 = int_to_ptr.vmem [resolvable:$true] %s291
      %297 = dma.vmem_to_hbm [thread:$0]  %s292, 256, %s3, [#allocation4], 128, 128, 8
    $region33: #{tpu_custom_call.1} parent=1 // pred_fallthru
      _
    // Predicated region
    $region34: #{tpu_custom_call.1} parent=1 // pred_check
      _
    $region35: #{tpu_custom_call.1} parent=1 // pred_check_branch
      %299 = sbr.rel (0) target = $region37
    $region36: #{tpu_custom_call.1} parent=1 // pred_region
      %300 = dma.done [#allocation4], 256
    $region37: #{tpu_custom_call.1} parent=1 // pred_fallthru
      _
    %301 = vsyncpa [#allocation3], 1
    %302 = vsyncpa [#allocation6], 1
    %303 = vsyncpa [#allocation4], 1

</llo_original>
